<compile_context>
chip_gen: v5e
topology: v5e:2x2
jax: 0.10.0
libtpu: 0.0.40
codegen_flags: <defaults>
</compile_context>

<pallas_src>
import jax
import jax.numpy as jnp
from jax.experimental import pallas as pl
from jax.experimental.pallas import tpu as pltpu


def regressor_kernel(x_ref, w1_ref, b1_ref, w2_ref, b2_ref, o_ref):
    # x_ref: [TB, 32]  (natural layout: batch on sublanes, features on lanes)
    x = x_ref[...].astype(jnp.float32)
    # r_dropout: identity at inference time.
    h = jnp.maximum(x, 0.0)                                               # r_relu1
    h = jnp.dot(h, w1_ref[...], preferred_element_type=jnp.float32)       # r_fc2   -> [TB, 16]
    h = jnp.maximum(h + b1_ref[...], 0.0)                                 # r_relu2
    logits = jnp.dot(h, w2_ref[...], preferred_element_type=jnp.float32)  # r_pred  -> [TB, 11]
    logits = logits + b2_ref[...]
    # r_pred_softmax over the class axis (axis -1 == PyTorch dim=1), stable & exact.
    m = jnp.max(logits, axis=-1, keepdims=True)
    e = jnp.exp(logits - m)
    s = jnp.sum(e, axis=-1, keepdims=True)
    o_ref[...] = (e / s).astype(o_ref.dtype)


def _round_up(n, m):
    return ((n + m - 1) // m) * m


def regressor_forward(x, w1, b1, w2, b2, *, block_b=16384, out_dtype=None):
    """x: [B, 32]; w1: [32, 16]; b1: [16] or [1,16]; w2: [16, 11]; b2: [11] or [1,11]."""
    B, n_in = x.shape
    _, n_hid = w1.shape
    n_out = w2.shape[1]
    out_dtype = jnp.dtype(out_dtype) if out_dtype is not None else jnp.dtype(x.dtype)

    # Pad batch only to a lane multiple (128). Pick the step count first and derive
    # the tile from it so the tile divides the padded batch (no tile-sized padding).
    # Keep >= 2 grid steps when the batch allows so v7x's 2 TCs both get work.
    bp128 = _round_up(max(B, 1), 128)
    n_steps = max(pl.cdiv(bp128, block_b), 2 if bp128 >= 256 else 1)
    tb = _round_up(pl.cdiv(bp128, n_steps), 128)
    bp = n_steps * tb

    xp = x if bp == B else jnp.pad(x, ((0, bp - B), (0, 0)))
    # Weights/biases are tiny (<1k params); keep them f32 for the f32 accumulate path.
    w1f = w1.astype(jnp.float32)
    w2f = w2.astype(jnp.float32)
    b1r = jnp.reshape(b1, (1, n_hid)).astype(jnp.float32)
    b2r = jnp.reshape(b2, (1, n_out)).astype(jnp.float32)

    x_item = jnp.dtype(x.dtype).itemsize
    o_item = out_dtype.itemsize
    w_bytes = 4 * (n_in * n_hid + n_hid * n_out + n_hid + n_out)
    cost = pl.CostEstimate(
        flops=2 * bp * (n_in * n_hid + n_hid * n_out),
        transcendentals=bp * n_out,
        bytes_accessed=bp * n_in * x_item + bp * n_out * o_item + w_bytes,
    )

    # Double-buffered footprint ~ 2*tb*(in_bytes + out_bytes) per step; only raise the
    # scoped-VMEM limit when a caller-supplied block_b exceeds v5e's 16 MiB default.
    vmem_needed = 2 * tb * (n_in * x_item + n_out * o_item) + w_bytes + (2 << 20)
    cp_kwargs = dict(dimension_semantics=("parallel",))  # v7x: shard batch across 2 TCs
    if vmem_needed > (16 << 20):
        cp_kwargs["vmem_limit_bytes"] = int(vmem_needed)

    out = pl.pallas_call(
        regressor_kernel,
        out_shape=jax.ShapeDtypeStruct((bp, n_out), out_dtype),
        grid=(bp // tb,),
        in_specs=[
            pl.BlockSpec((tb, n_in), lambda i: (i, 0)),      # x tile (natural layout)
            pl.BlockSpec((n_in, n_hid), lambda i: (0, 0)),   # W1 (resident)
            pl.BlockSpec((1, n_hid), lambda i: (0, 0)),      # b1 row
            pl.BlockSpec((n_hid, n_out), lambda i: (0, 0)),  # W2 (resident)
            pl.BlockSpec((1, n_out), lambda i: (0, 0)),      # b2 row
        ],
        out_specs=pl.BlockSpec((tb, n_out), lambda i: (i, 0)),
        compiler_params=pltpu.CompilerParams(**cp_kwargs),
        cost_estimate=cost,
    )(xp, w1f, b1r, w2f, b2r)

    return out if bp == B else out[:B]


def regressor_reference(x, w1, b1, w2, b2):
    hi = jax.lax.Precision.HIGHEST
    h = jnp.maximum(x.astype(jnp.float32), 0.0)
    h = jnp.maximum(jnp.dot(h, w1, precision=hi) + jnp.reshape(b1, (1, -1)), 0.0)
    logits = jnp.dot(h, w2, precision=hi) + jnp.reshape(b2, (1, -1))
    return jax.nn.softmax(logits, axis=-1)


def init_params(key):
    # Deterministic init matching nn.Linear shapes (stored transposed: [in, out]).
    k1, k2, k3, k4 = jax.random.split(key, 4)
    bound1 = 1.0 / jnp.sqrt(32.0)
    w1 = jax.random.uniform(k1, (32, 16), jnp.float32, -bound1, bound1)
    b1 = jax.random.uniform(k2, (1, 16), jnp.float32, -bound1, bound1)
    bound2 = 1.0 / jnp.sqrt(16.0)
    w2 = jax.random.uniform(k3, (16, 11), jnp.float32, -bound2, bound2)
    b2 = jax.random.uniform(k4, (1, 11), jnp.float32, -bound2, bound2)
    return w1, b1, w2, b2


if __name__ == "__main__":
    key = jax.random.PRNGKey(0)
    kx, kx2, kp = jax.random.split(key, 3)
    w1, b1, w2, b2 = init_params(kp)

    # Small batch (single grid step).
    B = 8
    x = jax.random.normal(kx, (B, 32), jnp.float32)
    out = jax.block_until_ready(regressor_forward(x, w1, b1, w2, b2))
    assert out.shape == (B, 11)
    assert bool(jnp.allclose(jnp.sum(out, axis=-1), 1.0, atol=1e-4))
    ref = regressor_reference(x, w1, b1, w2, b2)
    assert bool(jnp.allclose(out, ref, atol=2e-3))

    # Batch that exercises 128-padding and a multi-step grid (v7x megacore path).
    B2 = 300
    x2 = jax.random.normal(kx2, (B2, 32), jnp.float32)
    out2 = jax.block_until_ready(regressor_forward(x2, w1, b1, w2, b2))
    assert out2.shape == (B2, 11)
    assert bool(jnp.allclose(jnp.sum(out2, axis=-1), 1.0, atol=1e-4))
    ref2 = regressor_reference(x2, w1, b1, w2, b2)
    assert bool(jnp.allclose(out2, ref2, atol=2e-3))

    print("KERNEL_OK")
</pallas_src>

<mosaic_0001>
module attributes {stable_mosaic.version = 11 : i64} {
  func.func @regressor_kernel(%arg0: i32, %arg1: memref<128x32xf32, #tpu.memory_space<vmem>>, %arg2: memref<32x16xf32, #tpu.memory_space<vmem>>, %arg3: memref<1x16xf32, #tpu.memory_space<vmem>>, %arg4: memref<16x11xf32, #tpu.memory_space<vmem>>, %arg5: memref<1x11xf32, #tpu.memory_space<vmem>>, %arg6: memref<128x11xf32, #tpu.memory_space<vmem>>) attributes {dimension_semantics = [#tpu.dimension_semantics<parallel>], iteration_bounds = array<i64: 1>, scalar_prefetch = 0 : i64, scratch_operands = 0 : i64, tpu.core_type = #tpu.core_type<tc>, window_params = [{transform_indices = @transform_0, window_bounds = array<i64: 128, 32>}, {pipeline_mode = #tpu.pipeline_mode<synchronous>, transform_indices = @transform_1, window_bounds = array<i64: 32, 16>}, {pipeline_mode = #tpu.pipeline_mode<synchronous>, transform_indices = @transform_2, window_bounds = array<i64: 1, 16>}, {pipeline_mode = #tpu.pipeline_mode<synchronous>, transform_indices = @transform_3, window_bounds = array<i64: 16, 11>}, {pipeline_mode = #tpu.pipeline_mode<synchronous>, transform_indices = @transform_4, window_bounds = array<i64: 1, 11>}, {transform_indices = @transform_5, window_bounds = array<i64: 128, 11>}]} {
    %c0 = arith.constant 0 : index
    %c0_0 = arith.constant 0 : index
    %0 = vector.load %arg1[%c0, %c0_0] : memref<128x32xf32, #tpu.memory_space<vmem>>, vector<128x32xf32>
    %cst = arith.constant 0.000000e+00 : f32
    %1 = vector.broadcast %cst : f32 to vector<128x32xf32>
    %2 = arith.maximumf %0, %1 : vector<128x32xf32>
    %c0_1 = arith.constant 0 : index
    %c0_2 = arith.constant 0 : index
    %3 = vector.load %arg2[%c0_1, %c0_2] : memref<32x16xf32, #tpu.memory_space<vmem>>, vector<32x16xf32>
    %cst_3 = arith.constant dense<0.000000e+00> : vector<128x16xf32>
    %4 = tpu.matmul %2, %3, %cst_3 {dimension_numbers = #tpu.dot_dimension_numbers<[1], [0], [0], [1], [0, 0, 1, 1], [], []>} : vector<128x32xf32>, vector<32x16xf32>, vector<128x16xf32> -> vector<128x16xf32>
    %c0_4 = arith.constant 0 : index
    %c0_5 = arith.constant 0 : index
    %5 = vector.load %arg3[%c0_4, %c0_5] : memref<1x16xf32, #tpu.memory_space<vmem>>, vector<1x16xf32>
    %6 = vector.broadcast %5 : vector<1x16xf32> to vector<128x16xf32>
    %7 = arith.addf %4, %6 : vector<128x16xf32>
    %cst_6 = arith.constant 0.000000e+00 : f32
    %8 = vector.broadcast %cst_6 : f32 to vector<128x16xf32>
    %9 = arith.maximumf %7, %8 : vector<128x16xf32>
    %c0_7 = arith.constant 0 : index
    %c0_8 = arith.constant 0 : index
    %10 = vector.load %arg4[%c0_7, %c0_8] : memref<16x11xf32, #tpu.memory_space<vmem>>, vector<16x11xf32>
    %cst_9 = arith.constant dense<0.000000e+00> : vector<128x11xf32>
    %11 = tpu.matmul %9, %10, %cst_9 {dimension_numbers = #tpu.dot_dimension_numbers<[1], [0], [0], [1], [0, 0, 1, 1], [], []>} : vector<128x16xf32>, vector<16x11xf32>, vector<128x11xf32> -> vector<128x11xf32>
    %c0_10 = arith.constant 0 : index
    %c0_11 = arith.constant 0 : index
    %12 = vector.load %arg5[%c0_10, %c0_11] : memref<1x11xf32, #tpu.memory_space<vmem>>, vector<1x11xf32>
    %13 = vector.broadcast %12 : vector<1x11xf32> to vector<128x11xf32>
    %14 = arith.addf %11, %13 : vector<128x11xf32>
    %cst_12 = arith.constant dense<0xFF800000> : vector<128xf32>
    %15 = vector.multi_reduction <maximumf>, %14, %cst_12 [1] : vector<128x11xf32> to vector<128xf32>
    %16 = vector.shape_cast %15 : vector<128xf32> to vector<128x1xf32>
    %17 = vector.broadcast %16 : vector<128x1xf32> to vector<128x11xf32>
    %18 = arith.subf %14, %17 : vector<128x11xf32>
    %19 = math.exp %18 : vector<128x11xf32>
    %cst_13 = arith.constant dense<0.000000e+00> : vector<128xf32>
    %20 = vector.multi_reduction <add>, %19, %cst_13 [1] : vector<128x11xf32> to vector<128xf32>
    %21 = vector.shape_cast %20 : vector<128xf32> to vector<128x1xf32>
    %22 = vector.broadcast %21 : vector<128x1xf32> to vector<128x11xf32>
    %23 = arith.divf %19, %22 : vector<128x11xf32>
    %c0_14 = arith.constant 0 : index
    %c0_15 = arith.constant 0 : index
    %24 = vector.load %arg6[%c0_14, %c0_15] : memref<128x11xf32, #tpu.memory_space<vmem>>, vector<128x11xf32>
    tpu.vector_store %arg6[%c0_14, %c0_15], %23 {strides = array<i32>} : memref<128x11xf32, #tpu.memory_space<vmem>>, vector<128x11xf32>,
    return
  }
  func.func @transform_0(%arg0: i32) -> (i32, i32) {
    %c0_i32 = arith.constant 0 : i32
    %c0_i32_0 = arith.constant 0 : i32
    return %arg0, %c0_i32 : i32, i32
  }
  func.func @transform_1(%arg0: i32) -> (i32, i32) {
    %c0_i32 = arith.constant 0 : i32
    %c0_i32_0 = arith.constant 0 : i32
    %c0_i32_1 = arith.constant 0 : i32
    return %c0_i32, %c0_i32_0 : i32, i32
  }
  func.func @transform_2(%arg0: i32) -> (i32, i32) {
    %c0_i32 = arith.constant 0 : i32
    %c0_i32_0 = arith.constant 0 : i32
    %c0_i32_1 = arith.constant 0 : i32
    return %c0_i32, %c0_i32_0 : i32, i32
  }
  func.func @transform_3(%arg0: i32) -> (i32, i32) {
    %c0_i32 = arith.constant 0 : i32
    %c0_i32_0 = arith.constant 0 : i32
    %c0_i32_1 = arith.constant 0 : i32
    return %c0_i32, %c0_i32_0 : i32, i32
  }
  func.func @transform_4(%arg0: i32) -> (i32, i32) {
    %c0_i32 = arith.constant 0 : i32
    %c0_i32_0 = arith.constant 0 : i32
    %c0_i32_1 = arith.constant 0 : i32
    return %c0_i32, %c0_i32_0 : i32, i32
  }
  func.func @transform_5(%arg0: i32) -> (i32, i32) {
    %c0_i32 = arith.constant 0 : i32
    %c0_i32_0 = arith.constant 0 : i32
    return %arg0, %c0_i32 : i32, i32
  }
}

</mosaic_0001>

<llo_original>
// kernel: tpu_custom_call.1
$region0: #{tpu_custom_call.1}
  #allocation0 [shape = 'u32[]', space=smem, size = 0x4, offset = 0x4, fixed_abs, tag = 'smem constant byte address 0x4 - core index']
  #allocation1 [shape = 'u32[72,128]{1,0:T(1,128)}', space=vmem, size = 0x9000, scoped, tag = 'internal scratch']
  %s0 = inlined_call_operand.vmem [shape: f32[128,32], index: 0, kind: input, shape index: {}]
  %s1 = inlined_call_operand.vmem [shape: f32[32,16], index: 1, kind: input, shape index: {}]
  %s2 = inlined_call_operand.vmem [shape: f32[1,16], index: 2, kind: input, shape index: {}]
  %s3 = inlined_call_operand.vmem [shape: f32[16,11], index: 3, kind: input, shape index: {}]
  %s4 = inlined_call_operand.vmem [shape: f32[1,11], index: 4, kind: input, shape index: {}]
  %s5 = inlined_call_operand.vmem [shape: f32[128,11], index: 5, kind: output, shape index: {}]
  %s6 = sld [smem:[#allocation0]]
  $region30: #{tpu_custom_call.1} parent=0
    _
  %s8 = ssub.s32 1, %s6
  %s9 = scalar_select 0, %s8, %s6
  // Predicated region
  $region2: #{tpu_custom_call.1} parent=0 // pred_check
    _
  $region3: #{tpu_custom_call.1} parent=0 // pred_check_branch
    %11 = sbr.rel (0) target = $region5
  $region4: #{tpu_custom_call.1} parent=0 // pred_region
    _
  $region5: #{tpu_custom_call.1} parent=0 // pred_fallthru
    _
  // Predicated region
  $region6: #{tpu_custom_call.1} parent=0 // pred_check
    _
  $region7: #{tpu_custom_call.1} parent=0 // pred_check_branch
    %13 = sbr.rel (0) target = $region9
  $region8: #{tpu_custom_call.1} parent=0 // pred_region
    _
  $region9: #{tpu_custom_call.1} parent=0 // pred_fallthru
    _
  // Predicated region
  $region10: #{tpu_custom_call.1} parent=0 // pred_check
    _
  $region11: #{tpu_custom_call.1} parent=0 // pred_check_branch
    %15 = sbr.rel (0) target = $region13
  $region12: #{tpu_custom_call.1} parent=0 // pred_region
    _
  $region13: #{tpu_custom_call.1} parent=0 // pred_fallthru
    _
  // Predicated region
  $region14: #{tpu_custom_call.1} parent=0 // pred_check
    _
  $region15: #{tpu_custom_call.1} parent=0 // pred_check_branch
    %17 = sbr.rel (0) target = $region17
  $region16: #{tpu_custom_call.1} parent=0 // pred_region
    _
  $region17: #{tpu_custom_call.1} parent=0 // pred_fallthru
    _
  // Predicated region
  $region18: #{tpu_custom_call.1} parent=0 // pred_check
    _
  $region19: #{tpu_custom_call.1} parent=0 // pred_check_branch
    %19 = sbr.rel (0) target = $region21
  $region20: #{tpu_custom_call.1} parent=0 // pred_region
    _
  $region21: #{tpu_custom_call.1} parent=0 // pred_fallthru
    _
  %v20 = vld [vmem:[%s0] sm:$0xff]
  %v21 = vld [vmem:[%s0 + $0x8] sm:$0xff]
  %v22 = vld [vmem:[%s0 + $0x10] sm:$0xff]
  %v23 = vld [vmem:[%s0 + $0x18] sm:$0xff]
  %v24 = vld [vmem:[%s0 + $0x20] sm:$0xff]
  %v25 = vld [vmem:[%s0 + $0x28] sm:$0xff]
  %v26 = vld [vmem:[%s0 + $0x30] sm:$0xff]
  %v27 = vld [vmem:[%s0 + $0x38] sm:$0xff]
  %v28 = vld [vmem:[%s0 + $0x40] sm:$0xff]
  %v29 = vld [vmem:[%s0 + $0x48] sm:$0xff]
  %v30 = vld [vmem:[%s0 + $0x50] sm:$0xff]
  %v31 = vld [vmem:[%s0 + $0x58] sm:$0xff]
  %v32 = vld [vmem:[%s0 + $0x60] sm:$0xff]
  %v33 = vld [vmem:[%s0 + $0x68] sm:$0xff]
  %v34 = vld [vmem:[%s0 + $0x70] sm:$0xff]
  %v35 = vld [vmem:[%s0 + $0x78] sm:$0xff]
  %v36 = vmax.f32 %v20, 0.0
  %v37 = vmax.f32 %v21, 0.0
  %v38 = vmax.f32 %v22, 0.0
  %v39 = vmax.f32 %v23, 0.0
  %v40 = vmax.f32 %v24, 0.0
  %v41 = vmax.f32 %v25, 0.0
  %v42 = vmax.f32 %v26, 0.0
  %v43 = vmax.f32 %v27, 0.0
  %v44 = vmax.f32 %v28, 0.0
  %v45 = vmax.f32 %v29, 0.0
  %v46 = vmax.f32 %v30, 0.0
  %v47 = vmax.f32 %v31, 0.0
  %v48 = vmax.f32 %v32, 0.0
  %v49 = vmax.f32 %v33, 0.0
  %v50 = vmax.f32 %v34, 0.0
  %v51 = vmax.f32 %v35, 0.0
  %v52 = vld [vmem:[%s1] sm:$0xff]
  %v53 = vld [vmem:[%s1 + $0x8] sm:$0xff]
  %v54 = vld [vmem:[%s1 + $0x10] sm:$0xff]
  %v55 = vld [vmem:[%s1 + $0x18] sm:$0xff]
  %v56 = vld [vmem:[%s2] sm:$0x1]
  %v58 = vperm.slane %v56, 0
  %vm60 = vcmask 261120
  %v62 = vsel %vm60, %v36, 0
  %v65 = vsel %vm60, %v37, 0
  %v68 = vsel %vm60, %v38, 0
  %v71 = vsel %vm60, %v39, 0
  %v74 = vsel %vm60, %v40, 0
  %v77 = vsel %vm60, %v41, 0
  %v80 = vsel %vm60, %v42, 0
  %v83 = vsel %vm60, %v43, 0
  %v86 = vsel %vm60, %v44, 0
  %v89 = vsel %vm60, %v45, 0
  %v92 = vsel %vm60, %v46, 0
  %v95 = vsel %vm60, %v47, 0
  %v98 = vsel %vm60, %v48, 0
  %v101 = vsel %vm60, %v49, 0
  %v104 = vsel %vm60, %v50, 0
  %v107 = vsel %vm60, %v51, 0
  %109 = vmatpush.msra.mxu0 0.0
  %110 = vmatpush.msra.mxu0 0.0
  %111 = vmatpush.msra.mxu0 0.0
  %112 = vmatpush.msra.mxu0 0.0
  %113 = vmatpush.msra.mxu0 0.0
  %114 = vmatpush.msra.mxu0 0.0
  %115 = vmatpush.msra.mxu0 0.0
  %116 = vmatpush.msra.mxu0 0.0
  %117 = vmatpush.msra.mxu0 0.0
  %118 = vmatpush.msra.mxu0 0.0
  %119 = vmatpush.msra.mxu0 0.0
  %120 = vmatpush.msra.mxu0 0.0
  %121 = vmatpush.msra.mxu0 %v55
  %122 = vmatpush.msra.mxu0 %v54
  %123 = vmatpush.msra.mxu0 %v53
  %124 = vmatpush.msra.mxu0 %v52
  %125 = vmatmul.f32.gmra.mxu0 %v62
  %v126 = vpop.f32.mrf.mxu0
  %v127 = vadd.f32 %v58, %v126
  %128 = vmatmul.f32.gmra.mxu0 %v65
  %v129 = vpop.f32.mrf.mxu0
  %v130 = vadd.f32 %v58, %v129
  %131 = vmatmul.f32.gmra.mxu0 %v68
  %v132 = vpop.f32.mrf.mxu0
  %v133 = vadd.f32 %v58, %v132
  %134 = vmatmul.f32.gmra.mxu0 %v71
  %v135 = vpop.f32.mrf.mxu0
  %v136 = vadd.f32 %v58, %v135
  %137 = vmatmul.f32.gmra.mxu0 %v74
  %v138 = vpop.f32.mrf.mxu0
  %v139 = vadd.f32 %v58, %v138
  %140 = vmatmul.f32.gmra.mxu0 %v77
  %v141 = vpop.f32.mrf.mxu0
  %v142 = vadd.f32 %v58, %v141
  %143 = vmatmul.f32.gmra.mxu0 %v80
  %v144 = vpop.f32.mrf.mxu0
  %v145 = vadd.f32 %v58, %v144
  %146 = vmatmul.f32.gmra.mxu0 %v83
  %v147 = vpop.f32.mrf.mxu0
  %v148 = vadd.f32 %v58, %v147
  %149 = vmatmul.f32.gmra.mxu0 %v86
  %v150 = vpop.f32.mrf.mxu0
  %v151 = vadd.f32 %v58, %v150
  %152 = vmatmul.f32.gmra.mxu0 %v89
  %v153 = vpop.f32.mrf.mxu0
  %v154 = vadd.f32 %v58, %v153
  %155 = vmatmul.f32.gmra.mxu0 %v92
  %v156 = vpop.f32.mrf.mxu0
  %v157 = vadd.f32 %v58, %v156
  %158 = vmatmul.f32.gmra.mxu0 %v95
  %v159 = vpop.f32.mrf.mxu0
  %v160 = vadd.f32 %v58, %v159
  %161 = vmatmul.f32.gmra.mxu0 %v98
  %v162 = vpop.f32.mrf.mxu0
  %v163 = vadd.f32 %v58, %v162
  %164 = vmatmul.f32.gmra.mxu0 %v101
  %v165 = vpop.f32.mrf.mxu0
  %v166 = vadd.f32 %v58, %v165
  %167 = vmatmul.f32.gmra.mxu0 %v104
  %v168 = vpop.f32.mrf.mxu0
  %v169 = vadd.f32 %v58, %v168
  %170 = vmatmul.f32.gmra.mxu0 %v107
  %v171 = vpop.f32.mrf.mxu0
  %v172 = vadd.f32 %v58, %v171
  %173 = vdwg.mxu0
  %v174 = vmax.f32 %v127, 0.0
  %v175 = vmax.f32 %v130, 0.0
  %v176 = vmax.f32 %v133, 0.0
  %v177 = vmax.f32 %v136, 0.0
  %v178 = vmax.f32 %v139, 0.0
  %v179 = vmax.f32 %v142, 0.0
  %v180 = vmax.f32 %v145, 0.0
  %v181 = vmax.f32 %v148, 0.0
  %v182 = vmax.f32 %v151, 0.0
  %v183 = vmax.f32 %v154, 0.0
  %v184 = vmax.f32 %v157, 0.0
  %v185 = vmax.f32 %v160, 0.0
  %v186 = vmax.f32 %v163, 0.0
  %v187 = vmax.f32 %v166, 0.0
  %v188 = vmax.f32 %v169, 0.0
  %v189 = vmax.f32 %v172, 0.0
  %v190 = vld [vmem:[%s3] sm:$0xff]
  %v191 = vld [vmem:[%s3 + $0x8] sm:$0xff]
  %v192 = vld [vmem:[%s4] sm:$0x1]
  %v194 = vperm.slane %v192, 0
  %vm196 = vcmask 130048
  %v198 = vsel %vm196, %v174, 0
  %v201 = vsel %vm196, %v175, 0
  %v204 = vsel %vm196, %v176, 0
  %v207 = vsel %vm196, %v177, 0
  %v210 = vsel %vm196, %v178, 0
  %v213 = vsel %vm196, %v179, 0
  %v216 = vsel %vm196, %v180, 0
  %v219 = vsel %vm196, %v181, 0
  %v222 = vsel %vm196, %v182, 0
  %v225 = vsel %vm196, %v183, 0
  %v228 = vsel %vm196, %v184, 0
  %v231 = vsel %vm196, %v185, 0
  %v234 = vsel %vm196, %v186, 0
  %v237 = vsel %vm196, %v187, 0
  %v240 = vsel %vm196, %v188, 0
  %v243 = vsel %vm196, %v189, 0
  %245 = vmatpush.msra.mxu0 0.0
  %246 = vmatpush.msra.mxu0 0.0
  %247 = vmatpush.msra.mxu0 0.0
  %248 = vmatpush.msra.mxu0 0.0
  %249 = vmatpush.msra.mxu0 0.0
  %250 = vmatpush.msra.mxu0 0.0
  %251 = vmatpush.msra.mxu0 0.0
  %252 = vmatpush.msra.mxu0 0.0
  %253 = vmatpush.msra.mxu0 0.0
  %254 = vmatpush.msra.mxu0 0.0
  %255 = vmatpush.msra.mxu0 0.0
  %256 = vmatpush.msra.mxu0 0.0
  %257 = vmatpush.msra.mxu0 0.0
  %258 = vmatpush.msra.mxu0 0.0
  %259 = vmatpush.msra.mxu0 %v191
  %260 = vmatpush.msra.mxu0 %v190
  %261 = vmatmul.f32.gmra.mxu0 %v198
  %v262 = vpop.f32.mrf.mxu0
  %v263 = vadd.f32 %v194, %v262
  %264 = vmatmul.f32.gmra.mxu0 %v201
  %v265 = vpop.f32.mrf.mxu0
  %v266 = vadd.f32 %v194, %v265
  %267 = vmatmul.f32.gmra.mxu0 %v204
  %v268 = vpop.f32.mrf.mxu0
  %v269 = vadd.f32 %v194, %v268
  %270 = vmatmul.f32.gmra.mxu0 %v207
  %v271 = vpop.f32.mrf.mxu0
  %v272 = vadd.f32 %v194, %v271
  %273 = vmatmul.f32.gmra.mxu0 %v210
  %v274 = vpop.f32.mrf.mxu0
  %v275 = vadd.f32 %v194, %v274
  %276 = vmatmul.f32.gmra.mxu0 %v213
  %v277 = vpop.f32.mrf.mxu0
  %v278 = vadd.f32 %v194, %v277
  %279 = vmatmul.f32.gmra.mxu0 %v216
  %v280 = vpop.f32.mrf.mxu0
  %v281 = vadd.f32 %v194, %v280
  %282 = vmatmul.f32.gmra.mxu0 %v219
  %v283 = vpop.f32.mrf.mxu0
  %v284 = vadd.f32 %v194, %v283
  %285 = vmatmul.f32.gmra.mxu0 %v222
  %v286 = vpop.f32.mrf.mxu0
  %v287 = vadd.f32 %v194, %v286
  %288 = vmatmul.f32.gmra.mxu0 %v225
  %v289 = vpop.f32.mrf.mxu0
  %v290 = vadd.f32 %v194, %v289
  %291 = vmatmul.f32.gmra.mxu0 %v228
  %v292 = vpop.f32.mrf.mxu0
  %v293 = vadd.f32 %v194, %v292
  %294 = vmatmul.f32.gmra.mxu0 %v231
  %v295 = vpop.f32.mrf.mxu0
  %v296 = vadd.f32 %v194, %v295
  %297 = vmatmul.f32.gmra.mxu0 %v234
  %v298 = vpop.f32.mrf.mxu0
  %v299 = vadd.f32 %v194, %v298
  %300 = vmatmul.f32.gmra.mxu0 %v237
  %v301 = vpop.f32.mrf.mxu0
  %v302 = vadd.f32 %v194, %v301
  %303 = vmatmul.f32.gmra.mxu0 %v240
  %v304 = vpop.f32.mrf.mxu0
  %v305 = vadd.f32 %v194, %v304
  %306 = vmatmul.f32.gmra.mxu0 %v243
  %v307 = vpop.f32.mrf.mxu0
  %v308 = vadd.f32 %v194, %v307
  %309 = vdwg.mxu0
  %vm310 = vcmask 89088
  %v311 = vsel %vm310, %v263, -inf
  %312 = vmax.xlane.f32.xlu0 %v311
  %v313 = vpop.xlane.xlu0 %312
  %v314 = vsel %vm310, %v266, -inf
  %315 = vmax.xlane.f32.xlu0 %v314
  %v316 = vpop.xlane.xlu0 %315
  %v317 = vsel %vm310, %v269, -inf
  %318 = vmax.xlane.f32.xlu0 %v317
  %v319 = vpop.xlane.xlu0 %318
  %v320 = vsel %vm310, %v272, -inf
  %321 = vmax.xlane.f32.xlu0 %v320
  %v322 = vpop.xlane.xlu0 %321
  %v323 = vsel %vm310, %v275, -inf
  %324 = vmax.xlane.f32.xlu0 %v323
  %v325 = vpop.xlane.xlu0 %324
  %v326 = vsel %vm310, %v278, -inf
  %327 = vmax.xlane.f32.xlu0 %v326
  %v328 = vpop.xlane.xlu0 %327
  %v329 = vsel %vm310, %v281, -inf
  %330 = vmax.xlane.f32.xlu0 %v329
  %v331 = vpop.xlane.xlu0 %330
  %v332 = vsel %vm310, %v284, -inf
  %333 = vmax.xlane.f32.xlu0 %v332
  %v334 = vpop.xlane.xlu0 %333
  %v335 = vsel %vm310, %v287, -inf
  %336 = vmax.xlane.f32.xlu0 %v335
  %v337 = vpop.xlane.xlu0 %336
  %v338 = vsel %vm310, %v290, -inf
  %339 = vmax.xlane.f32.xlu0 %v338
  %v340 = vpop.xlane.xlu0 %339
  %v341 = vsel %vm310, %v293, -inf
  %342 = vmax.xlane.f32.xlu0 %v341
  %v343 = vpop.xlane.xlu0 %342
  %v344 = vsel %vm310, %v296, -inf
  %345 = vmax.xlane.f32.xlu0 %v344
  %v346 = vpop.xlane.xlu0 %345
  %v347 = vsel %vm310, %v299, -inf
  %348 = vmax.xlane.f32.xlu0 %v347
  %v349 = vpop.xlane.xlu0 %348
  %v350 = vsel %vm310, %v302, -inf
  %351 = vmax.xlane.f32.xlu0 %v350
  %v352 = vpop.xlane.xlu0 %351
  %v353 = vsel %vm310, %v305, -inf
  %354 = vmax.xlane.f32.xlu0 %v353
  %v355 = vpop.xlane.xlu0 %354
  %v356 = vsel %vm310, %v308, -inf
  %357 = vmax.xlane.f32.xlu0 %v356
  %v358 = vpop.xlane.xlu0 %357
  %v359 = vsub.f32 %v263, %v313
  %v360 = vsub.f32 %v266, %v316
  %v361 = vsub.f32 %v269, %v319
  %v362 = vsub.f32 %v272, %v322
  %v363 = vsub.f32 %v275, %v325
  %v364 = vsub.f32 %v278, %v328
  %v365 = vsub.f32 %v281, %v331
  %v366 = vsub.f32 %v284, %v334
  %v367 = vsub.f32 %v287, %v337
  %v368 = vsub.f32 %v290, %v340
  %v369 = vsub.f32 %v293, %v343
  %v370 = vsub.f32 %v296, %v346
  %v371 = vsub.f32 %v299, %v349
  %v372 = vsub.f32 %v302, %v352
  %v373 = vsub.f32 %v305, %v355
  %v374 = vsub.f32 %v308, %v358
  %v375 = vmul.f32 %v359, 1.442695
  %v376 = vpow.pop %v375
  %v377 = vmul.f32 %v360, 1.442695
  %v378 = vpow.pop %v377
  %v379 = vmul.f32 %v361, 1.442695
  %v380 = vpow.pop %v379
  %v381 = vmul.f32 %v362, 1.442695
  %v382 = vpow.pop %v381
  %v383 = vmul.f32 %v363, 1.442695
  %v384 = vpow.pop %v383
  %v385 = vmul.f32 %v364, 1.442695
  %v386 = vpow.pop %v385
  %v387 = vmul.f32 %v365, 1.442695
  %v388 = vpow.pop %v387
  %v389 = vmul.f32 %v366, 1.442695
  %v390 = vpow.pop %v389
  %v391 = vmul.f32 %v367, 1.442695
  %v392 = vpow.pop %v391
  %v393 = vmul.f32 %v368, 1.442695
  %v394 = vpow.pop %v393
  %v395 = vmul.f32 %v369, 1.442695
  %v396 = vpow.pop %v395
  %v397 = vmul.f32 %v370, 1.442695
  %v398 = vpow.pop %v397
  %v399 = vmul.f32 %v371, 1.442695
  %v400 = vpow.pop %v399
  %v401 = vmul.f32 %v372, 1.442695
  %v402 = vpow.pop %v401
  %v403 = vmul.f32 %v373, 1.442695
  %v404 = vpow.pop %v403
  %v405 = vmul.f32 %v374, 1.442695
  %v406 = vpow.pop %v405
  %v407 = vsel %vm310, %v376, 0.0
  %408 = vadd.xlane.f32.xlu0 %v407
  %v409 = vpop.xlane.xlu0 %408
  %v410 = vsel %vm310, %v378, 0.0
  %411 = vadd.xlane.f32.xlu0 %v410
  %v412 = vpop.xlane.xlu0 %411
  %v413 = vsel %vm310, %v380, 0.0
  %414 = vadd.xlane.f32.xlu0 %v413
  %v415 = vpop.xlane.xlu0 %414
  %v416 = vsel %vm310, %v382, 0.0
  %417 = vadd.xlane.f32.xlu0 %v416
  %v418 = vpop.xlane.xlu0 %417
  %v419 = vsel %vm310, %v384, 0.0
  %420 = vadd.xlane.f32.xlu0 %v419
  %v421 = vpop.xlane.xlu0 %420
  %v422 = vsel %vm310, %v386, 0.0
  %423 = vadd.xlane.f32.xlu0 %v422
  %v424 = vpop.xlane.xlu0 %423
  %v425 = vsel %vm310, %v388, 0.0
  %426 = vadd.xlane.f32.xlu0 %v425
  %v427 = vpop.xlane.xlu0 %426
  %v428 = vsel %vm310, %v390, 0.0
  %429 = vadd.xlane.f32.xlu0 %v428
  %v430 = vpop.xlane.xlu0 %429
  %v431 = vsel %vm310, %v392, 0.0
  %432 = vadd.xlane.f32.xlu0 %v431
  %v433 = vpop.xlane.xlu0 %432
  %v434 = vsel %vm310, %v394, 0.0
  %435 = vadd.xlane.f32.xlu0 %v434
  %v436 = vpop.xlane.xlu0 %435
  %v437 = vsel %vm310, %v396, 0.0
  %438 = vadd.xlane.f32.xlu0 %v437
  %v439 = vpop.xlane.xlu0 %438
  %v440 = vsel %vm310, %v398, 0.0
  %441 = vadd.xlane.f32.xlu0 %v440
  %v442 = vpop.xlane.xlu0 %441
  %v443 = vsel %vm310, %v400, 0.0
  %444 = vadd.xlane.f32.xlu0 %v443
  %v445 = vpop.xlane.xlu0 %444
  %v446 = vsel %vm310, %v402, 0.0
  %447 = vadd.xlane.f32.xlu0 %v446
  %v448 = vpop.xlane.xlu0 %447
  %v449 = vsel %vm310, %v404, 0.0
  %450 = vadd.xlane.f32.xlu0 %v449
  %v451 = vpop.xlane.xlu0 %450
  %v452 = vsel %vm310, %v406, 0.0
  %453 = vadd.xlane.f32.xlu0 %v452
  %v454 = vpop.xlane.xlu0 %453
  %v455 = vrcp.pop %v409
  %v456 = vmul.f32 %v409, %v455
  %v457 = vsub.f32 1.0, %v456
  %v458 = vmul.f32 %v455, %v457
  %v459 = vadd.f32 %v455, %v458
  %vm460 = vweird.f32 %v409
  %vm461 = vweird.f32 %v455
  %vm462 = vmor %vm460, %vm461
  %v463 = vsel %vm462, %v455, %v459
  %v464 = vand.u32 2147483647, %v409
  %vm465 = vcmp.eq.f32.partialorder %v464, 8.507059e+37
  %v466 = vand.u32 %v409, 2147483648
  %v467 = vor.u32 1.1754944e-38, %v466
  %v468 = vsel %vm465, %v467, %v463
  %v469 = vmul.f32 %v376, %v468
  %v470 = vrcp.pop %v412
  %v471 = vmul.f32 %v412, %v470
  %v472 = vsub.f32 1.0, %v471
  %v473 = vmul.f32 %v470, %v472
  %v474 = vadd.f32 %v470, %v473
  %vm475 = vweird.f32 %v412
  %vm476 = vweird.f32 %v470
  %vm477 = vmor %vm475, %vm476
  %v478 = vsel %vm477, %v470, %v474
  %v479 = vand.u32 2147483647, %v412
  %vm480 = vcmp.eq.f32.partialorder %v479, 8.507059e+37
  %v481 = vand.u32 %v412, 2147483648
  %v482 = vor.u32 1.1754944e-38, %v481
  %v483 = vsel %vm480, %v482, %v478
  %v484 = vmul.f32 %v378, %v483
  %v485 = vrcp.pop %v415
  %v486 = vmul.f32 %v415, %v485
  %v487 = vsub.f32 1.0, %v486
  %v488 = vmul.f32 %v485, %v487
  %v489 = vadd.f32 %v485, %v488
  %vm490 = vweird.f32 %v415
  %vm491 = vweird.f32 %v485
  %vm492 = vmor %vm490, %vm491
  %v493 = vsel %vm492, %v485, %v489
  %v494 = vand.u32 2147483647, %v415
  %vm495 = vcmp.eq.f32.partialorder %v494, 8.507059e+37
  %v496 = vand.u32 %v415, 2147483648
  %v497 = vor.u32 1.1754944e-38, %v496
  %v498 = vsel %vm495, %v497, %v493
  %v499 = vmul.f32 %v380, %v498
  %v500 = vrcp.pop %v418
  %v501 = vmul.f32 %v418, %v500
  %v502 = vsub.f32 1.0, %v501
  %v503 = vmul.f32 %v500, %v502
  %v504 = vadd.f32 %v500, %v503
  %vm505 = vweird.f32 %v418
  %vm506 = vweird.f32 %v500
  %vm507 = vmor %vm505, %vm506
  %v508 = vsel %vm507, %v500, %v504
  %v509 = vand.u32 2147483647, %v418
  %vm510 = vcmp.eq.f32.partialorder %v509, 8.507059e+37
  %v511 = vand.u32 %v418, 2147483648
  %v512 = vor.u32 1.1754944e-38, %v511
  %v513 = vsel %vm510, %v512, %v508
  %v514 = vmul.f32 %v382, %v513
  %v515 = vrcp.pop %v421
  %v516 = vmul.f32 %v421, %v515
  %v517 = vsub.f32 1.0, %v516
  %v518 = vmul.f32 %v515, %v517
  %v519 = vadd.f32 %v515, %v518
  %vm520 = vweird.f32 %v421
  %vm521 = vweird.f32 %v515
  %vm522 = vmor %vm520, %vm521
  %v523 = vsel %vm522, %v515, %v519
  %v524 = vand.u32 2147483647, %v421
  %vm525 = vcmp.eq.f32.partialorder %v524, 8.507059e+37
  %v526 = vand.u32 %v421, 2147483648
  %v527 = vor.u32 1.1754944e-38, %v526
  %v528 = vsel %vm525, %v527, %v523
  %v529 = vmul.f32 %v384, %v528
  %v530 = vrcp.pop %v424
  %v531 = vmul.f32 %v424, %v530
  %v532 = vsub.f32 1.0, %v531
  %v533 = vmul.f32 %v530, %v532
  %v534 = vadd.f32 %v530, %v533
  %vm535 = vweird.f32 %v424
  %vm536 = vweird.f32 %v530
  %vm537 = vmor %vm535, %vm536
  %v538 = vsel %vm537, %v530, %v534
  %v539 = vand.u32 2147483647, %v424
  %vm540 = vcmp.eq.f32.partialorder %v539, 8.507059e+37
  %v541 = vand.u32 %v424, 2147483648
  %v542 = vor.u32 1.1754944e-38, %v541
  %v543 = vsel %vm540, %v542, %v538
  %v544 = vmul.f32 %v386, %v543
  %v545 = vrcp.pop %v427
  %v546 = vmul.f32 %v427, %v545
  %v547 = vsub.f32 1.0, %v546
  %v548 = vmul.f32 %v545, %v547
  %v549 = vadd.f32 %v545, %v548
  %vm550 = vweird.f32 %v427
  %vm551 = vweird.f32 %v545
  %vm552 = vmor %vm550, %vm551
  %v553 = vsel %vm552, %v545, %v549
  %v554 = vand.u32 2147483647, %v427
  %vm555 = vcmp.eq.f32.partialorder %v554, 8.507059e+37
  %v556 = vand.u32 %v427, 2147483648
  %v557 = vor.u32 1.1754944e-38, %v556
  %v558 = vsel %vm555, %v557, %v553
  %v559 = vmul.f32 %v388, %v558
  %v560 = vrcp.pop %v430
  %v561 = vmul.f32 %v430, %v560
  %v562 = vsub.f32 1.0, %v561
  %v563 = vmul.f32 %v560, %v562
  %v564 = vadd.f32 %v560, %v563
  %vm565 = vweird.f32 %v430
  %vm566 = vweird.f32 %v560
  %vm567 = vmor %vm565, %vm566
  %v568 = vsel %vm567, %v560, %v564
  %v569 = vand.u32 2147483647, %v430
  %vm570 = vcmp.eq.f32.partialorder %v569, 8.507059e+37
  %v571 = vand.u32 %v430, 2147483648
  %v572 = vor.u32 1.1754944e-38, %v571
  %v573 = vsel %vm570, %v572, %v568
  %v574 = vmul.f32 %v390, %v573
  %v575 = vrcp.pop %v433
  %v576 = vmul.f32 %v433, %v575
  %v577 = vsub.f32 1.0, %v576
  %v578 = vmul.f32 %v575, %v577
  %v579 = vadd.f32 %v575, %v578
  %vm580 = vweird.f32 %v433
  %vm581 = vweird.f32 %v575
  %vm582 = vmor %vm580, %vm581
  %v583 = vsel %vm582, %v575, %v579
  %v584 = vand.u32 2147483647, %v433
  %vm585 = vcmp.eq.f32.partialorder %v584, 8.507059e+37
  %v586 = vand.u32 %v433, 2147483648
  %v587 = vor.u32 1.1754944e-38, %v586
  %v588 = vsel %vm585, %v587, %v583
  %v589 = vmul.f32 %v392, %v588
  %v590 = vrcp.pop %v436
  %v591 = vmul.f32 %v436, %v590
  %v592 = vsub.f32 1.0, %v591
  %v593 = vmul.f32 %v590, %v592
  %v594 = vadd.f32 %v590, %v593
  %vm595 = vweird.f32 %v436
  %vm596 = vweird.f32 %v590
  %vm597 = vmor %vm595, %vm596
  %v598 = vsel %vm597, %v590, %v594
  %v599 = vand.u32 2147483647, %v436
  %vm600 = vcmp.eq.f32.partialorder %v599, 8.507059e+37
  %v601 = vand.u32 %v436, 2147483648
  %v602 = vor.u32 1.1754944e-38, %v601
  %v603 = vsel %vm600, %v602, %v598
  %v604 = vmul.f32 %v394, %v603
  %v605 = vrcp.pop %v439
  %v606 = vmul.f32 %v439, %v605
  %v607 = vsub.f32 1.0, %v606
  %v608 = vmul.f32 %v605, %v607
  %v609 = vadd.f32 %v605, %v608
  %vm610 = vweird.f32 %v439
  %vm611 = vweird.f32 %v605
  %vm612 = vmor %vm610, %vm611
  %v613 = vsel %vm612, %v605, %v609
  %v614 = vand.u32 2147483647, %v439
  %vm615 = vcmp.eq.f32.partialorder %v614, 8.507059e+37
  %v616 = vand.u32 %v439, 2147483648
  %v617 = vor.u32 1.1754944e-38, %v616
  %v618 = vsel %vm615, %v617, %v613
  %v619 = vmul.f32 %v396, %v618
  %v620 = vrcp.pop %v442
  %v621 = vmul.f32 %v442, %v620
  %v622 = vsub.f32 1.0, %v621
  %v623 = vmul.f32 %v620, %v622
  %v624 = vadd.f32 %v620, %v623
  %vm625 = vweird.f32 %v442
  %vm626 = vweird.f32 %v620
  %vm627 = vmor %vm625, %vm626
  %v628 = vsel %vm627, %v620, %v624
  %v629 = vand.u32 2147483647, %v442
  %vm630 = vcmp.eq.f32.partialorder %v629, 8.507059e+37
  %v631 = vand.u32 %v442, 2147483648
  %v632 = vor.u32 1.1754944e-38, %v631
  %v633 = vsel %vm630, %v632, %v628
  %v634 = vmul.f32 %v398, %v633
  %v635 = vrcp.pop %v445
  %v636 = vmul.f32 %v445, %v635
  %v637 = vsub.f32 1.0, %v636
  %v638 = vmul.f32 %v635, %v637
  %v639 = vadd.f32 %v635, %v638
  %vm640 = vweird.f32 %v445
  %vm641 = vweird.f32 %v635
  %vm642 = vmor %vm640, %vm641
  %v643 = vsel %vm642, %v635, %v639
  %v644 = vand.u32 2147483647, %v445
  %vm645 = vcmp.eq.f32.partialorder %v644, 8.507059e+37
  %v646 = vand.u32 %v445, 2147483648
  %v647 = vor.u32 1.1754944e-38, %v646
  %v648 = vsel %vm645, %v647, %v643
  %v649 = vmul.f32 %v400, %v648
  %v650 = vrcp.pop %v448
  %v651 = vmul.f32 %v448, %v650
  %v652 = vsub.f32 1.0, %v651
  %v653 = vmul.f32 %v650, %v652
  %v654 = vadd.f32 %v650, %v653
  %vm655 = vweird.f32 %v448
  %vm656 = vweird.f32 %v650
  %vm657 = vmor %vm655, %vm656
  %v658 = vsel %vm657, %v650, %v654
  %v659 = vand.u32 2147483647, %v448
  %vm660 = vcmp.eq.f32.partialorder %v659, 8.507059e+37
  %v661 = vand.u32 %v448, 2147483648
  %v662 = vor.u32 1.1754944e-38, %v661
  %v663 = vsel %vm660, %v662, %v658
  %v664 = vmul.f32 %v402, %v663
  %v665 = vrcp.pop %v451
  %v666 = vmul.f32 %v451, %v665
  %v667 = vsub.f32 1.0, %v666
  %v668 = vmul.f32 %v665, %v667
  %v669 = vadd.f32 %v665, %v668
  %vm670 = vweird.f32 %v451
  %vm671 = vweird.f32 %v665
  %vm672 = vmor %vm670, %vm671
  %v673 = vsel %vm672, %v665, %v669
  %v674 = vand.u32 2147483647, %v451
  %vm675 = vcmp.eq.f32.partialorder %v674, 8.507059e+37
  %v676 = vand.u32 %v451, 2147483648
  %v677 = vor.u32 1.1754944e-38, %v676
  %v678 = vsel %vm675, %v677, %v673
  %v679 = vmul.f32 %v404, %v678
  %v680 = vrcp.pop %v454
  %v681 = vmul.f32 %v454, %v680
  %v682 = vsub.f32 1.0, %v681
  %v683 = vmul.f32 %v680, %v682
  %v684 = vadd.f32 %v680, %v683
  %vm685 = vweird.f32 %v454
  %vm686 = vweird.f32 %v680
  %vm687 = vmor %vm685, %vm686
  %v688 = vsel %vm687, %v680, %v684
  %v689 = vand.u32 2147483647, %v454
  %vm690 = vcmp.eq.f32.partialorder %v689, 8.507059e+37
  %v691 = vand.u32 %v454, 2147483648
  %v692 = vor.u32 1.1754944e-38, %v691
  %v693 = vsel %vm690, %v692, %v688
  %v694 = vmul.f32 %v406, %v693
  %695 = vst.msk [vmem:[%s5] sm:$0xff] %vm310, %v469
  %696 = vst.msk [vmem:[%s5 + $0x8] sm:$0xff] %vm310, %v484
  %697 = vst.msk [vmem:[%s5 + $0x10] sm:$0xff] %vm310, %v499
  %698 = vst.msk [vmem:[%s5 + $0x18] sm:$0xff] %vm310, %v514
  %699 = vst.msk [vmem:[%s5 + $0x20] sm:$0xff] %vm310, %v529
  %700 = vst.msk [vmem:[%s5 + $0x28] sm:$0xff] %vm310, %v544
  %701 = vst.msk [vmem:[%s5 + $0x30] sm:$0xff] %vm310, %v559
  %702 = vst.msk [vmem:[%s5 + $0x38] sm:$0xff] %vm310, %v574
  %703 = vst.msk [vmem:[%s5 + $0x40] sm:$0xff] %vm310, %v589
  %704 = vst.msk [vmem:[%s5 + $0x48] sm:$0xff] %vm310, %v604
  %705 = vst.msk [vmem:[%s5 + $0x50] sm:$0xff] %vm310, %v619
  %706 = vst.msk [vmem:[%s5 + $0x58] sm:$0xff] %vm310, %v634
  %707 = vst.msk [vmem:[%s5 + $0x60] sm:$0xff] %vm310, %v649
  %708 = vst.msk [vmem:[%s5 + $0x68] sm:$0xff] %vm310, %v664
  %709 = vst.msk [vmem:[%s5 + $0x70] sm:$0xff] %vm310, %v679
  %710 = vst.msk [vmem:[%s5 + $0x78] sm:$0xff] %vm310, %v694
  // Predicated region
  $region22: #{tpu_custom_call.1} parent=0 // pred_check
    _
  $region23: #{tpu_custom_call.1} parent=0 // pred_check_branch
    %712 = sbr.rel (0) target = $region25
  $region24: #{tpu_custom_call.1} parent=0 // pred_region
    _
  $region25: #{tpu_custom_call.1} parent=0 // pred_fallthru
    _
  // Predicated region
  $region26: #{tpu_custom_call.1} parent=0 // pred_check
    _
  $region27: #{tpu_custom_call.1} parent=0 // pred_check_branch
    %714 = sbr.rel (0) target = $region29
  $region28: #{tpu_custom_call.1} parent=0 // pred_region
    _
  $region29: #{tpu_custom_call.1} parent=0 // pred_fallthru
    _

</llo_original>
